<compile_context>
chip_gen: v7x
topology: tpu7x:2x2x1
jax: 0.10.0
libtpu: 0.0.40
codegen_flags: <defaults>
</compile_context>

<pallas_src>
import jax
import jax.numpy as jnp
from jax import lax
from jax.experimental import pallas as pl
from jax.experimental.pallas import tpu as pltpu


_LANE = 128
_SUBLANE = 8


def _round_up(n, m):
    return ((n + m - 1) // m) * m


def _mlp_kernel(x_ref, w1_ref, b1_ref, w2_ref, b2_ref, o_ref):
    """Fused two-layer MLP on one batch tile: relu(x @ W1^T + b1) @ W2^T + b2.

    x_ref : (TILE_B, d_in)          (tiled over batch)
    w1_ref: (h, d_in)               torch (out, in) layout, resident
    b1_ref: (1, h)        f32       resident
    w2_ref: (d_out, h)              torch (out, in) layout, resident
    b2_ref: (1, d_out)    f32       resident
    o_ref : (TILE_B, d_out)
    """
    x = x_ref[...]
    # fc1: contract last axis of x (K=d_in) with last axis of torch (h, d_in).
    h = lax.dot_general(
        x, w1_ref[...],
        dimension_numbers=(((1,), (1,)), ((), ())),
        preferred_element_type=jnp.float32)                     # (TILE_B, h) f32
    h = jnp.maximum(h + b1_ref[...].astype(jnp.float32), 0.0)   # bias + relu
    # Match the second matmul's input dtype to the weights (no-op in f32 mode).
    h = h.astype(w2_ref.dtype)
    # fc2: contract last axis of h (K=h) with last axis of torch (d_out, h).
    y = lax.dot_general(
        h, w2_ref[...],
        dimension_numbers=(((1,), (1,)), ((), ())),
        preferred_element_type=jnp.float32)                     # (TILE_B, d_out) f32
    o_ref[...] = (y + b2_ref[...].astype(jnp.float32)).astype(o_ref.dtype)


def moment_coxian_two_layer_net(x, w1, b1, w2, b2, *, tile_b=8192, io_dtype=None):
    """Forward pass matching the PyTorch module.

    Args:
      x:  (B, 2*cox_dim - 1) float32
      w1: (h, 2*cox_dim - 1) float32   -- torch nn.Linear weight layout (out, in)
      b1: (h,) float32
      w2: (2*cox_dim - 1, h) float32
      b2: (2*cox_dim - 1,) float32
      tile_b:   requested batch tile (clamped to the VMEM budget).
      io_dtype: optional activation/weight I/O dtype (e.g. jnp.bfloat16) to
                halve HBM traffic; accumulation stays f32.  Default: x.dtype.
    Returns:
      (B, 2*cox_dim - 1) in io_dtype (or x.dtype if io_dtype is None).
    """
    B, d_in = x.shape
    h_dim = w1.shape[0]
    d_out = w2.shape[0]

    act_dtype = jnp.dtype(io_dtype) if io_dtype is not None else x.dtype
    if x.dtype != act_dtype:
        x = x.astype(act_dtype)
        w1 = w1.astype(act_dtype)
        w2 = w2.astype(act_dtype)
    esize = jnp.dtype(act_dtype).itemsize

    # --- Real per-row VMEM footprint (last dims lane-pad to 128) ---------------
    # double-buffered x and out tiles:
    per_row = 2 * esize * (_round_up(d_in, _LANE) + _round_up(d_out, _LANE))
    # f32 h / y intermediates live in VMEM for the duration of the body:
    per_row += 4 * (_round_up(h_dim, _LANE) + _round_up(d_out, _LANE))

    VMEM_BUDGET = 40 << 20          # safe on v5e/v6e (128 MiB) and v7x (64 MiB/TC)
    HEADROOM = 2 << 20              # resident weights/biases + compiler scratch
    max_tb = max(_SUBLANE,
                 ((VMEM_BUDGET - HEADROOM) // per_row) // _SUBLANE * _SUBLANE)
    tile_b = min(int(tile_b), max_tb)

    # --- Grid: even split, >=2 tiles for decently sized batches (v7x megacore),
    #     no full-array padding (Pallas masks the trailing partial block). ------
    min_tiles = 2 if B >= 1024 else 1
    n_tiles = max(pl.cdiv(B, tile_b), min_tiles)
    tb = _round_up(pl.cdiv(B, n_tiles), _SUBLANE)
    grid = (pl.cdiv(B, tb),)

    vmem_needed = tb * per_row + HEADROOM
    vmem_limit = min(max(32 << 20, vmem_needed + (8 << 20)), 56 << 20)

    # Biases as (1, out) rows for clean in-kernel broadcast; kept f32.
    b1_2d = b1.astype(jnp.float32).reshape(1, h_dim)
    b2_2d = b2.astype(jnp.float32).reshape(1, d_out)

    weight_bytes = esize * (h_dim * d_in + d_out * h_dim) + 4 * (h_dim + d_out)
    cost = pl.CostEstimate(
        flops=2 * B * (d_in * h_dim + h_dim * d_out),
        transcendentals=0,
        bytes_accessed=esize * B * (d_in + d_out) + weight_bytes,
    )

    return pl.pallas_call(
        _mlp_kernel,
        out_shape=jax.ShapeDtypeStruct((B, d_out), act_dtype),
        grid=grid,
        in_specs=[
            pl.BlockSpec((tb, d_in), lambda i: (i, 0)),        # x: tiled over batch
            pl.BlockSpec((h_dim, d_in), lambda i: (0, 0)),     # W1: resident
            pl.BlockSpec((1, h_dim), lambda i: (0, 0)),        # b1: resident
            pl.BlockSpec((d_out, h_dim), lambda i: (0, 0)),    # W2: resident
            pl.BlockSpec((1, d_out), lambda i: (0, 0)),        # b2: resident
        ],
        out_specs=pl.BlockSpec((tb, d_out), lambda i: (i, 0)),
        compiler_params=pltpu.CompilerParams(
            dimension_semantics=("parallel",),
            vmem_limit_bytes=int(vmem_limit)),
        cost_estimate=cost,
    )(x, w1, b1_2d, w2, b2_2d)


def _reference(x, w1, b1, w2, b2):
    h = jnp.maximum(x @ w1.T + b1, 0.0)
    return h @ w2.T + b2


if __name__ == "__main__":
    # Shapes consistent with the module defaults: cox_dim=8 -> in/out dim 15, h=100.
    cox_dim = 8
    d_io = 2 * cox_dim - 1     # 15
    h_dim = 100

    key = jax.random.PRNGKey(0)
    kx, kw1, kb1, kw2, kb2 = jax.random.split(key, 5)

    # Deterministic parameter init (uniform, roughly torch's default scale).
    s1 = 1.0 / jnp.sqrt(d_io)
    s2 = 1.0 / jnp.sqrt(h_dim)
    w1 = jax.random.uniform(kw1, (h_dim, d_io), jnp.float32, -s1, s1)
    b1 = jax.random.uniform(kb1, (h_dim,), jnp.float32, -s1, s1)
    w2 = jax.random.uniform(kw2, (d_io, h_dim), jnp.float32, -s2, s2)
    b2 = jax.random.uniform(kb2, (d_io,), jnp.float32, -s2, s2)

    # Case 1: tiny batch (single tile, exact fit).
    batch = 8
    x = jax.random.normal(kx, (batch, d_io), dtype=jnp.float32)
    out = jax.block_until_ready(moment_coxian_two_layer_net(x, w1, b1, w2, b2))
    ref = _reference(x, w1, b1, w2, b2)
    assert out.shape == (batch, d_io), out.shape
    assert jnp.allclose(out, ref, atol=1e-5, rtol=1e-5), "mismatch (batch=8)"

    # Case 2: batch not a multiple of 8 — exercises the masked trailing block.
    batch2 = 13
    x2 = jax.random.normal(kx, (batch2, d_io), dtype=jnp.float32)
    out2 = jax.block_until_ready(moment_coxian_two_layer_net(x2, w1, b1, w2, b2))
    ref2 = _reference(x2, w1, b1, w2, b2)
    assert out2.shape == (batch2, d_io), out2.shape
    assert jnp.allclose(out2, ref2, atol=1e-5, rtol=1e-5), "mismatch (batch=13)"

    # Case 3: multi-tile grid with a partial last tile (small tile_b override).
    batch3 = 300
    x3 = jax.random.normal(kx, (batch3, d_io), dtype=jnp.float32)
    out3 = jax.block_until_ready(
        moment_coxian_two_layer_net(x3, w1, b1, w2, b2, tile_b=128))
    ref3 = _reference(x3, w1, b1, w2, b2)
    assert out3.shape == (batch3, d_io), out3.shape
    assert jnp.allclose(out3, ref3, atol=1e-5, rtol=1e-5), "mismatch (batch=300)"

    print("KERNEL_OK")
</pallas_src>

<mosaic_0001>
module attributes {stable_mosaic.version = 11 : i64} {
  func.func @_mlp_kernel(%arg0: i32, %arg1: memref<8x15xf32, #tpu.memory_space<vmem>>, %arg2: memref<100x15xf32, #tpu.memory_space<vmem>>, %arg3: memref<1x100xf32, #tpu.memory_space<vmem>>, %arg4: memref<15x100xf32, #tpu.memory_space<vmem>>, %arg5: memref<1x15xf32, #tpu.memory_space<vmem>>, %arg6: memref<8x15xf32, #tpu.memory_space<vmem>>) attributes {dimension_semantics = [#tpu.dimension_semantics<parallel>], iteration_bounds = array<i64: 1>, scalar_prefetch = 0 : i64, scratch_operands = 0 : i64, tpu.core_type = #tpu.core_type<tc>, window_params = [{transform_indices = @transform_0, window_bounds = array<i64: 8, 15>}, {pipeline_mode = #tpu.pipeline_mode<synchronous>, transform_indices = @transform_1, window_bounds = array<i64: 100, 15>}, {pipeline_mode = #tpu.pipeline_mode<synchronous>, transform_indices = @transform_2, window_bounds = array<i64: 1, 100>}, {pipeline_mode = #tpu.pipeline_mode<synchronous>, transform_indices = @transform_3, window_bounds = array<i64: 15, 100>}, {pipeline_mode = #tpu.pipeline_mode<synchronous>, transform_indices = @transform_4, window_bounds = array<i64: 1, 15>}, {transform_indices = @transform_5, window_bounds = array<i64: 8, 15>}]} {
    %c0 = arith.constant 0 : index
    %c0_0 = arith.constant 0 : index
    %0 = vector.load %arg1[%c0, %c0_0] : memref<8x15xf32, #tpu.memory_space<vmem>>, vector<8x15xf32>
    %c0_1 = arith.constant 0 : index
    %c0_2 = arith.constant 0 : index
    %1 = vector.load %arg2[%c0_1, %c0_2] : memref<100x15xf32, #tpu.memory_space<vmem>>, vector<100x15xf32>
    %cst = arith.constant dense<0.000000e+00> : vector<8x100xf32>
    %2 = tpu.matmul %0, %1, %cst {dimension_numbers = #tpu.dot_dimension_numbers<[1], [1], [0], [0], [0, 0, 1, 0], [], []>} : vector<8x15xf32>, vector<100x15xf32>, vector<8x100xf32> -> vector<8x100xf32>
    %c0_3 = arith.constant 0 : index
    %c0_4 = arith.constant 0 : index
    %3 = vector.load %arg3[%c0_3, %c0_4] : memref<1x100xf32, #tpu.memory_space<vmem>>, vector<1x100xf32>
    %4 = vector.broadcast %3 : vector<1x100xf32> to vector<8x100xf32>
    %5 = arith.addf %2, %4 : vector<8x100xf32>
    %cst_5 = arith.constant 0.000000e+00 : f32
    %6 = vector.broadcast %cst_5 : f32 to vector<8x100xf32>
    %7 = arith.maximumf %5, %6 : vector<8x100xf32>
    %c0_6 = arith.constant 0 : index
    %c0_7 = arith.constant 0 : index
    %8 = vector.load %arg4[%c0_6, %c0_7] : memref<15x100xf32, #tpu.memory_space<vmem>>, vector<15x100xf32>
    %cst_8 = arith.constant dense<0.000000e+00> : vector<8x15xf32>
    %9 = tpu.matmul %7, %8, %cst_8 {dimension_numbers = #tpu.dot_dimension_numbers<[1], [1], [0], [0], [0, 0, 1, 0], [], []>} : vector<8x100xf32>, vector<15x100xf32>, vector<8x15xf32> -> vector<8x15xf32>
    %c0_9 = arith.constant 0 : index
    %c0_10 = arith.constant 0 : index
    %10 = vector.load %arg5[%c0_9, %c0_10] : memref<1x15xf32, #tpu.memory_space<vmem>>, vector<1x15xf32>
    %11 = vector.broadcast %10 : vector<1x15xf32> to vector<8x15xf32>
    %12 = arith.addf %9, %11 : vector<8x15xf32>
    %c0_11 = arith.constant 0 : index
    %c0_12 = arith.constant 0 : index
    %13 = vector.load %arg6[%c0_11, %c0_12] : memref<8x15xf32, #tpu.memory_space<vmem>>, vector<8x15xf32>
    tpu.vector_store %arg6[%c0_11, %c0_12], %12 {strides = array<i32>} : memref<8x15xf32, #tpu.memory_space<vmem>>, vector<8x15xf32>,
    return
  }
  func.func @transform_0(%arg0: i32) -> (i32, i32) {
    %c0_i32 = arith.constant 0 : i32
    %c0_i32_0 = arith.constant 0 : i32
    return %arg0, %c0_i32 : i32, i32
  }
  func.func @transform_1(%arg0: i32) -> (i32, i32) {
    %c0_i32 = arith.constant 0 : i32
    %c0_i32_0 = arith.constant 0 : i32
    %c0_i32_1 = arith.constant 0 : i32
    return %c0_i32, %c0_i32_0 : i32, i32
  }
  func.func @transform_2(%arg0: i32) -> (i32, i32) {
    %c0_i32 = arith.constant 0 : i32
    %c0_i32_0 = arith.constant 0 : i32
    %c0_i32_1 = arith.constant 0 : i32
    return %c0_i32, %c0_i32_0 : i32, i32
  }
  func.func @transform_3(%arg0: i32) -> (i32, i32) {
    %c0_i32 = arith.constant 0 : i32
    %c0_i32_0 = arith.constant 0 : i32
    %c0_i32_1 = arith.constant 0 : i32
    return %c0_i32, %c0_i32_0 : i32, i32
  }
  func.func @transform_4(%arg0: i32) -> (i32, i32) {
    %c0_i32 = arith.constant 0 : i32
    %c0_i32_0 = arith.constant 0 : i32
    %c0_i32_1 = arith.constant 0 : i32
    return %c0_i32, %c0_i32_0 : i32, i32
  }
  func.func @transform_5(%arg0: i32) -> (i32, i32) {
    %c0_i32 = arith.constant 0 : i32
    %c0_i32_0 = arith.constant 0 : i32
    return %arg0, %c0_i32 : i32, i32
  }
}

</mosaic_0001>

<llo_original>
// kernel: tpu_custom_call.1
$region0: #{tpu_custom_call.1}
  #allocation0 [shape = 'u32[]', space=smem, size = 0x4, offset = 0x4, fixed_abs, tag = 'smem constant byte address 0x4 - core index']
  #allocation1 [shape = 'u32[144,128]{1,0:T(1,128)}', space=vmem, size = 0x12000, scoped, tag = 'internal scratch']
  %s0 = inlined_call_operand.vmem [shape: f32[8,15], index: 0, kind: input, shape index: {}]
  %s1 = inlined_call_operand.vmem [shape: f32[100,15], index: 1, kind: input, shape index: {}]
  %s2 = inlined_call_operand.vmem [shape: f32[1,100], index: 2, kind: input, shape index: {}]
  %s3 = inlined_call_operand.vmem [shape: f32[15,100], index: 3, kind: input, shape index: {}]
  %s4 = inlined_call_operand.vmem [shape: f32[1,15], index: 4, kind: input, shape index: {}]
  %s5 = inlined_call_operand.hbm [shape: f32[8,15], index: 5, kind: output, shape index: {}]
  %s6 = sld [smem:[#allocation0]]
  $region30: #{tpu_custom_call.1} parent=0
    _
  %s8 = ssub.s32 1, %s6
  %s9 = scalar_select 0, %s8, %s6
  $region1: #{tpu_custom_call.1} parent=0
    #allocation2 [shape = 'u8[4096]{0}', space=vmem, size = 0x1000, scoped, tag = 'output window, operand 0, single buffered']
    #allocation3 [shape = 's32[1]{0}', space=sflag, size = 0x4, scoped, tag = 'scoped memory for tpu_custom_call.1']
    %10 = vsyncpa [#allocation3], 0
    // Predicated region
    $region2: #{tpu_custom_call.1} parent=1 // pred_check
      _
    $region3: #{tpu_custom_call.1} parent=1 // pred_check_branch
      %12 = sbr.rel (0) target = $region5
    $region4: #{tpu_custom_call.1} parent=1 // pred_region
      _
    $region5: #{tpu_custom_call.1} parent=1 // pred_fallthru
      _
    // Predicated region
    $region6: #{tpu_custom_call.1} parent=1 // pred_check
      _
    $region7: #{tpu_custom_call.1} parent=1 // pred_check_branch
      %14 = sbr.rel (0) target = $region9
    $region8: #{tpu_custom_call.1} parent=1 // pred_region
      _
    $region9: #{tpu_custom_call.1} parent=1 // pred_fallthru
      _
    // Predicated region
    $region10: #{tpu_custom_call.1} parent=1 // pred_check
      _
    $region11: #{tpu_custom_call.1} parent=1 // pred_check_branch
      %16 = sbr.rel (0) target = $region13
    $region12: #{tpu_custom_call.1} parent=1 // pred_region
      _
    $region13: #{tpu_custom_call.1} parent=1 // pred_fallthru
      _
    // Predicated region
    $region14: #{tpu_custom_call.1} parent=1 // pred_check
      _
    $region15: #{tpu_custom_call.1} parent=1 // pred_check_branch
      %18 = sbr.rel (0) target = $region17
    $region16: #{tpu_custom_call.1} parent=1 // pred_region
      _
    $region17: #{tpu_custom_call.1} parent=1 // pred_fallthru
      _
    // Predicated region
    $region18: #{tpu_custom_call.1} parent=1 // pred_check
      _
    $region19: #{tpu_custom_call.1} parent=1 // pred_check_branch
      %20 = sbr.rel (0) target = $region21
    $region20: #{tpu_custom_call.1} parent=1 // pred_region
      _
    $region21: #{tpu_custom_call.1} parent=1 // pred_fallthru
      _
    %v21 = vld [vmem:[%s0] sm:$0xff]
    %v22 = vld [vmem:[%s1] sm:$0xff]
    %v23 = vld [vmem:[%s1 + $0x8] sm:$0xff]
    %v24 = vld [vmem:[%s1 + $0x10] sm:$0xff]
    %v25 = vld [vmem:[%s1 + $0x18] sm:$0xff]
    %v26 = vld [vmem:[%s1 + $0x20] sm:$0xff]
    %v27 = vld [vmem:[%s1 + $0x28] sm:$0xff]
    %v28 = vld [vmem:[%s1 + $0x30] sm:$0xff]
    %v29 = vld [vmem:[%s1 + $0x38] sm:$0xff]
    %v30 = vld [vmem:[%s1 + $0x40] sm:$0xff]
    %v31 = vld [vmem:[%s1 + $0x48] sm:$0xff]
    %v32 = vld [vmem:[%s1 + $0x50] sm:$0xff]
    %v33 = vld [vmem:[%s1 + $0x58] sm:$0xff]
    %v34 = vld [vmem:[%s1 + $0x60] sm:$0xf]
    %v35 = vld [vmem:[%s2] sm:$0x1]
    %v37 = vlaneseq
    %v38 = vshrl.u32 %v37, 7
    %v39 = vsub.s32 0, %v38
    %v40 = vrot.slane %v35, %v39
    %vm42 = vcmask 121856
    %v44 = vsel %vm42, %v21, 0
    %v47 = vsel %vm42, %v22, 0
    %v50 = vsel %vm42, %v23, 0
    %v53 = vsel %vm42, %v24, 0
    %v56 = vsel %vm42, %v25, 0
    %v59 = vsel %vm42, %v26, 0
    %v62 = vsel %vm42, %v27, 0
    %v65 = vsel %vm42, %v28, 0
    %v68 = vsel %vm42, %v29, 0
    %v71 = vsel %vm42, %v30, 0
    %v74 = vsel %vm42, %v31, 0
    %v77 = vsel %vm42, %v32, 0
    %v80 = vsel %vm42, %v33, 0
    %v83 = vsel %vm42, %v34, 0
    %85 = vmatprep.subr.mxu0 0.0
    %86 = vmatpush1.xpose.msra.mxu0 %v47
    %87 = vmatprep.subr.mxu0 0.0
    %88 = vmatpush1.xpose.msra.mxu0 %v50
    %89 = vmatprep.subr.mxu0 0.0
    %90 = vmatpush1.xpose.msra.mxu0 %v53
    %91 = vmatprep.subr.mxu0 0.0
    %92 = vmatpush1.xpose.msra.mxu0 %v56
    %93 = vmatprep.subr.mxu0 0.0
    %94 = vmatpush1.xpose.msra.mxu0 %v59
    %95 = vmatprep.subr.mxu0 0.0
    %96 = vmatpush1.xpose.msra.mxu0 %v62
    %97 = vmatprep.subr.mxu0 0.0
    %98 = vmatpush1.xpose.msra.mxu0 %v65
    %99 = vmatprep.subr.mxu0 0.0
    %100 = vmatpush1.xpose.msra.mxu0 %v68
    %101 = vmatprep.subr.mxu0 0.0
    %102 = vmatpush1.xpose.msra.mxu0 %v71
    %103 = vmatprep.subr.mxu0 0.0
    %104 = vmatpush1.xpose.msra.mxu0 %v74
    %105 = vmatprep.subr.mxu0 0.0
    %106 = vmatpush1.xpose.msra.mxu0 %v77
    %107 = vmatprep.subr.mxu0 0.0
    %108 = vmatpush1.xpose.msra.mxu0 %v80
    %109 = vmatprep.subr.mxu0 0.0
    %110 = vmatpush1.xpose.msra.mxu0 %v83
    %111 = vmatprep.subr.mxu0 0.0
    %112 = vmatpush1.xpose.msra.mxu0 0.0
    %113 = vmatprep.subr.mxu0 0.0
    %114 = vmatpush1.xpose.msra.mxu0 0.0
    %115 = vmatprep.subr.mxu0 0.0
    %116 = vmatpush1.xpose.msra.mxu0 0.0
    %117 = vmatprep.subr.mxu0 0.0
    %118 = vmatpush1.xpose.msra.mxu0 0.0
    %119 = vmatprep.subr.mxu0 0.0
    %120 = vmatpush1.xpose.msra.mxu0 0.0
    %121 = vmatprep.subr.mxu0 0.0
    %122 = vmatpush1.xpose.msra.mxu0 0.0
    %123 = vmatprep.subr.mxu0 0.0
    %124 = vmatpush1.xpose.msra.mxu0 0.0
    %125 = vmatprep.subr.mxu0 0.0
    %126 = vmatpush1.xpose.msra.mxu0 0.0
    %127 = vmatprep.subr.mxu0 0.0
    %128 = vmatpush1.xpose.msra.mxu0 0.0
    %129 = vmatprep.subr.mxu0 0.0
    %130 = vmatpush1.xpose.msra.mxu0 0.0
    %131 = vmatprep.subr.mxu0 0.0
    %132 = vmatpush1.xpose.msra.mxu0 0.0
    %133 = vmatprep.subr.mxu0 0.0
    %134 = vmatpush1.xpose.msra.mxu0 0.0
    %135 = vmatprep.subr.mxu0 0.0
    %136 = vmatpush1.xpose.msra.mxu0 0.0
    %137 = vmatprep.subr.mxu0 0.0
    %138 = vmatpush1.xpose.msra.mxu0 0.0
    %139 = vmatprep.subr.mxu0 0.0
    %140 = vmatpush1.xpose.msra.mxu0 0.0
    %141 = vmatprep.subr.mxu0 0.0
    %142 = vmatpush1.xpose.msra.mxu0 0.0
    %143 = vmatprep.subr.mxu0 0.0
    %144 = vmatpush1.xpose.msra.mxu0 0.0
    %145 = vmatprep.subr.mxu0 0.0
    %146 = vmatpush1.xpose.msra.mxu0 0.0
    %147 = vmatprep.subr.mxu0 0.0
    %148 = vmatpush1.xpose.msra.mxu0 0.0
    %149 = vmatprep.mubr.f32.mxu0 0.0
    %150 = vmatmul.mubr.f32.gmra.mrb[0].mxu0 %v44
    %v151 = vpop.f32.mrb[0].mxu0
    %v152 = vadd.f32 %v40, %v151
    %v153 = vpop.f32.mrb[0].mxu0
    %154 = vdwg.mxu0
    %v155 = vmax.f32 %v152, 0.0
    %v156 = vld [vmem:[%s3] sm:$0xff]
    %v157 = vld [vmem:[%s3 + $0x8] sm:$0x7f]
    %v158 = vld [vmem:[%s4] sm:$0x1]
    %v160 = vlaneseq
    %v161 = vshrl.u32 %v160, 7
    %v162 = vsub.s32 0, %v161
    %v163 = vrot.slane %v158, %v162
    %vm165 = vcmask 818176
    %v167 = vsel %vm165, %v155, 0
    %v170 = vsel %vm165, %v156, 0
    %v173 = vsel %vm165, %v157, 0
    %175 = vmatprep.subr.mxu0 0.0
    %176 = vmatpush1.xpose.msra.mxu0 %v170
    %177 = vmatprep.subr.mxu0 0.0
    %178 = vmatpush1.xpose.msra.mxu0 %v173
    %179 = vmatprep.subr.mxu0 0.0
    %180 = vmatpush1.xpose.msra.mxu0 0.0
    %181 = vmatprep.subr.mxu0 0.0
    %182 = vmatpush1.xpose.msra.mxu0 0.0
    %183 = vmatprep.subr.mxu0 0.0
    %184 = vmatpush1.xpose.msra.mxu0 0.0
    %185 = vmatprep.subr.mxu0 0.0
    %186 = vmatpush1.xpose.msra.mxu0 0.0
    %187 = vmatprep.subr.mxu0 0.0
    %188 = vmatpush1.xpose.msra.mxu0 0.0
    %189 = vmatprep.subr.mxu0 0.0
    %190 = vmatpush1.xpose.msra.mxu0 0.0
    %191 = vmatprep.subr.mxu0 0.0
    %192 = vmatpush1.xpose.msra.mxu0 0.0
    %193 = vmatprep.subr.mxu0 0.0
    %194 = vmatpush1.xpose.msra.mxu0 0.0
    %195 = vmatprep.subr.mxu0 0.0
    %196 = vmatpush1.xpose.msra.mxu0 0.0
    %197 = vmatprep.subr.mxu0 0.0
    %198 = vmatpush1.xpose.msra.mxu0 0.0
    %199 = vmatprep.subr.mxu0 0.0
    %200 = vmatpush1.xpose.msra.mxu0 0.0
    %201 = vmatprep.subr.mxu0 0.0
    %202 = vmatpush1.xpose.msra.mxu0 0.0
    %203 = vmatprep.subr.mxu0 0.0
    %204 = vmatpush1.xpose.msra.mxu0 0.0
    %205 = vmatprep.subr.mxu0 0.0
    %206 = vmatpush1.xpose.msra.mxu0 0.0
    %207 = vmatprep.subr.mxu0 0.0
    %208 = vmatpush1.xpose.msra.mxu0 0.0
    %209 = vmatprep.subr.mxu0 0.0
    %210 = vmatpush1.xpose.msra.mxu0 0.0
    %211 = vmatprep.subr.mxu0 0.0
    %212 = vmatpush1.xpose.msra.mxu0 0.0
    %213 = vmatprep.subr.mxu0 0.0
    %214 = vmatpush1.xpose.msra.mxu0 0.0
    %215 = vmatprep.subr.mxu0 0.0
    %216 = vmatpush1.xpose.msra.mxu0 0.0
    %217 = vmatprep.subr.mxu0 0.0
    %218 = vmatpush1.xpose.msra.mxu0 0.0
    %219 = vmatprep.subr.mxu0 0.0
    %220 = vmatpush1.xpose.msra.mxu0 0.0
    %221 = vmatprep.subr.mxu0 0.0
    %222 = vmatpush1.xpose.msra.mxu0 0.0
    %223 = vmatprep.subr.mxu0 0.0
    %224 = vmatpush1.xpose.msra.mxu0 0.0
    %225 = vmatprep.subr.mxu0 0.0
    %226 = vmatpush1.xpose.msra.mxu0 0.0
    %227 = vmatprep.subr.mxu0 0.0
    %228 = vmatpush1.xpose.msra.mxu0 0.0
    %229 = vmatprep.subr.mxu0 0.0
    %230 = vmatpush1.xpose.msra.mxu0 0.0
    %231 = vmatprep.subr.mxu0 0.0
    %232 = vmatpush1.xpose.msra.mxu0 0.0
    %233 = vmatprep.subr.mxu0 0.0
    %234 = vmatpush1.xpose.msra.mxu0 0.0
    %235 = vmatprep.subr.mxu0 0.0
    %236 = vmatpush1.xpose.msra.mxu0 0.0
    %237 = vmatprep.subr.mxu0 0.0
    %238 = vmatpush1.xpose.msra.mxu0 0.0
    %239 = vmatprep.mubr.f32.mxu0 0.0
    %240 = vmatmul.mubr.f32.gmra.mrb[0].mxu0 %v167
    %v241 = vpop.f32.mrb[0].mxu0
    %v242 = vadd.f32 %v163, %v241
    %v243 = vpop.f32.mrb[0].mxu0
    %244 = vdwg.mxu0
    %245 = vst.msk [vmem:[#allocation2] sm:$0xff] %vm42, %v242
    // Predicated region
    $region22: #{tpu_custom_call.1} parent=1 // pred_check
      _
    $region23: #{tpu_custom_call.1} parent=1 // pred_check_branch
      %247 = sbr.rel (0) target = $region25
    $region24: #{tpu_custom_call.1} parent=1 // pred_region
      %s249 = ssub.s32 128, 128
      %250 = vsyncadd [#allocation3], %s249
      %s252 = sshll.u32 [#allocation2], 4
      %s253 = int_to_ptr.vmem [resolvable:$true] %s252
      %255 = dma.vmem_to_hbm [thread:$0]  %s253, 128, %s5, [#allocation3]
    $region25: #{tpu_custom_call.1} parent=1 // pred_fallthru
      _
    // Predicated region
    $region26: #{tpu_custom_call.1} parent=1 // pred_check
      _
    $region27: #{tpu_custom_call.1} parent=1 // pred_check_branch
      %257 = sbr.rel (0) target = $region29
    $region28: #{tpu_custom_call.1} parent=1 // pred_region
      %258 = dma.done [#allocation3], 128
    $region29: #{tpu_custom_call.1} parent=1 // pred_fallthru
      _
    %259 = vsyncpa [#allocation3], 1

</llo_original>
